<compile_context>
chip_gen: v7x
topology: tpu7x:2x2x1
jax: 0.10.0
libtpu: 0.0.40
codegen_flags: <defaults>
</compile_context>

<pallas_src>
import jax
import jax.numpy as jnp
from jax.experimental import pallas as pl
from jax.experimental.pallas import tpu as pltpu

# ---------------- configuration (mirrors CustomModel.__init__ args) ----------
B = 2                 # batch
CIN = 4               # image channels
H = W = 16            # spatial
P = H * W             # pixels per image
MODEL_CHANNELS = 32   # stand-in backbone feature width (resnet50 would be 2048)
EMBEDDING_DIM = 16    # embedding_dim
FC_LAYERS = [32, 16]  # fc_layers
# activations = ['relu', 'tanh'], batch_norms = ['batch', None], dropout=0.25 (eval)
NUM_CLASSES = 2
BN_EPS = 1e-5
LANE = 128            # TPU lane width

MC = MODEL_CHANNELS
FC1, FC2 = FC_LAYERS

# Dense weight-slab row layout (one (SLAB_ROWS, 128) f32 buffer).
#   rows CONV_R0..+MC : cols 0:CIN = conv_w^T, col CIN = conv_b
#   rows EF_R0..+FC1  : cols 0:MC  = (emb@fc1/P)^T, col MC  = fused bias
#   rows F2_R0..+FC2  : cols 0:FC1 = (BN-folded fc2)^T, col FC1 = folded bias
#   rows CL_R0..+NC   : cols 0:FC2 = cls_w^T, col FC2 = cls_b
CONV_R0 = 0
EF_R0 = CONV_R0 + MC          # 32
F2_R0 = EF_R0 + FC1           # 64
CL_R0 = F2_R0 + FC2           # 80
SLAB_ROWS = 88                # >= CL_R0 + NUM_CLASSES, multiple of 8


def custom_model_kernel(x_ref, w_ref, out_ref):
    """
    x_ref  : (CIN, B*P)        flat pixels, lane-dense (pixels on lanes)
    w_ref  : (SLAB_ROWS, 128)  dense packed weights/biases (see layout above)
    out_ref: (8, 128)          logits_t in [0:NUM_CLASSES, 0:B], rest zero
    """
    x = x_ref[...]            # (CIN, B*P) f32
    wp = w_ref[...]           # (SLAB_ROWS, 128) f32

    # --- stand-in backbone 1x1 conv + ReLU on the VPU -------------------------
    # h laid out (MC sublanes, B*P lanes) = 16 vregs; CIN broadcast-FMA steps.
    cw = wp[CONV_R0:CONV_R0 + MC, :]                     # (MC, 128)
    acc = cw[:, 0:1] * x[0:1, :]                         # (MC, B*P)
    for c in range(1, CIN):
        acc = acc + cw[:, c:c + 1] * x[c:c + 1, :]
    h = jnp.maximum(acc + cw[:, CIN:CIN + 1], 0.0)       # (MC, B*P)

    # --- global average pool as raw per-image SUM (1/P folded into w_ef) ------
    # Lane-segmented reduce: each image occupies P=256 aligned lanes.
    psum = jnp.concatenate(
        [jnp.sum(h[:, b * P:(b + 1) * P], axis=1, keepdims=True) for b in range(B)],
        axis=1)                                          # (MC, B)

    # --- embedding Linear + fc1 fused (1/P folded), ReLU ----------------------
    # Transposed orientation: features on sublanes, batch on lanes.
    wef = wp[EF_R0:EF_R0 + FC1, :]
    h1 = jnp.maximum(
        jnp.dot(wef[:, 0:MC], psum, preferred_element_type=jnp.float32)
        + wef[:, MC:MC + 1], 0.0)                        # (FC1, B)

    # --- fc2 Linear with BatchNorm1d (eval) pre-folded, then Tanh -------------
    # Dropout(p=0.25) in eval mode == identity.
    wf2 = wp[F2_R0:F2_R0 + FC2, :]
    h2 = jnp.tanh(
        jnp.dot(wf2[:, 0:FC1], h1, preferred_element_type=jnp.float32)
        + wf2[:, FC1:FC1 + 1])                           # (FC2, B)

    # --- classifier Linear -----------------------------------------------------
    wcl = wp[CL_R0:CL_R0 + NUM_CLASSES, :]
    logits_t = (jnp.dot(wcl[:, 0:FC2], h2, preferred_element_type=jnp.float32)
                + wcl[:, FC2:FC2 + 1])                   # (NC, B)

    out_ref[...] = jnp.zeros_like(out_ref)
    out_ref[0:NUM_CLASSES, 0:B] = logits_t.astype(out_ref.dtype)


def fold_and_pack_params(params):
    """Exact algebraic folding (eval mode) + dense packing. Run ONCE, not per call."""
    # embedding + fc1 fused; GAP's 1/P folded into the fused weight.
    w_ef = (params["emb_w"] @ params["fc1_w"]) / float(P)              # (MC, FC1)
    b_ef = params["emb_b"] @ params["fc1_w"] + params["fc1_b"]         # (1, FC1)

    # BatchNorm1d(running stats) is a per-feature affine after ReLU -> fold
    # into fc2: W' = diag(s) @ W, b' = t @ W + b.
    s = params["bn1_g"] * jax.lax.rsqrt(params["bn1_v"] + BN_EPS)      # (1, FC1)
    t = params["bn1_b"] - params["bn1_m"] * s                          # (1, FC1)
    fc2_w = params["fc2_w"] * s.T                                      # (FC1, FC2)
    fc2_b = t @ params["fc2_w"] + params["fc2_b"]                      # (1, FC2)

    slab = jnp.zeros((SLAB_ROWS, LANE), jnp.float32)
    # stand-in conv (transposed) + bias
    slab = slab.at[CONV_R0:CONV_R0 + MC, 0:CIN].set(params["conv_w"].T)
    slab = slab.at[CONV_R0:CONV_R0 + MC, CIN].set(params["conv_b"][0])
    # fused embedding+fc1 (transposed) + bias
    slab = slab.at[EF_R0:EF_R0 + FC1, 0:MC].set(w_ef.T)
    slab = slab.at[EF_R0:EF_R0 + FC1, MC].set(b_ef[0])
    # fc2 with BN folded (transposed) + bias
    slab = slab.at[F2_R0:F2_R0 + FC2, 0:FC1].set(fc2_w.T)
    slab = slab.at[F2_R0:F2_R0 + FC2, FC1].set(fc2_b[0])
    # classifier (transposed) + bias
    slab = slab.at[CL_R0:CL_R0 + NUM_CLASSES, 0:FC2].set(params["cls_w"].T)
    slab = slab.at[CL_R0:CL_R0 + NUM_CLASSES, FC2].set(params["cls_b"][0])
    return slab


@jax.jit
def custom_model_forward(x_nchw, w_slab):
    """x_nchw: (B, CIN, H, W) f32; w_slab: packed params -> logits (B, NUM_CLASSES)."""
    b, c, hh, ww = x_nchw.shape
    # NCHW -> (CIN, B*H*W): pixels lane-dense, image b in lane segment [b*P,(b+1)*P).
    x = x_nchw.reshape(b, c, hh * ww).transpose(1, 0, 2).reshape(c, b * hh * ww)

    out_block = pl.pallas_call(
        custom_model_kernel,
        out_shape=jax.ShapeDtypeStruct((8, LANE), jnp.float32),
        in_specs=[pl.BlockSpec(memory_space=pltpu.MemorySpace.VMEM)] * 2,
        out_specs=pl.BlockSpec(memory_space=pltpu.MemorySpace.VMEM),
    )(x, w_slab)
    return out_block[:NUM_CLASSES, :b].T                 # (B, NUM_CLASSES)


def init_params(key):
    """Deterministic parameter init. Linear weights stored as (in, out)."""
    ks = jax.random.split(key, 16)
    scale = 0.05
    return {
        # stand-in backbone 1x1 conv
        "conv_w": scale * jax.random.normal(ks[0], (CIN, MC), jnp.float32),
        "conv_b": scale * jax.random.normal(ks[1], (1, MC), jnp.float32),
        # embedding Linear (model_channels -> embedding_dim)
        "emb_w": scale * jax.random.normal(ks[2], (MC, EMBEDDING_DIM), jnp.float32),
        "emb_b": scale * jax.random.normal(ks[3], (1, EMBEDDING_DIM), jnp.float32),
        # fc1 (embedding_dim -> fc_layers[0]) + BatchNorm1d(fc_layers[0])
        "fc1_w": scale * jax.random.normal(ks[4], (EMBEDDING_DIM, FC1), jnp.float32),
        "fc1_b": scale * jax.random.normal(ks[5], (1, FC1), jnp.float32),
        "bn1_g": jnp.ones((1, FC1), jnp.float32),
        "bn1_b": jnp.zeros((1, FC1), jnp.float32),
        "bn1_m": 0.1 * jax.random.normal(ks[6], (1, FC1), jnp.float32),
        "bn1_v": jnp.abs(1.0 + 0.1 * jax.random.normal(ks[7], (1, FC1), jnp.float32)),
        # fc2 (fc_layers[0] -> fc_layers[1])
        "fc2_w": scale * jax.random.normal(ks[8], (FC1, FC2), jnp.float32),
        "fc2_b": scale * jax.random.normal(ks[9], (1, FC2), jnp.float32),
        # classifier (fc_layers[-1] -> num_classes)
        "cls_w": scale * jax.random.normal(ks[10], (FC2, NUM_CLASSES), jnp.float32),
        "cls_b": scale * jax.random.normal(ks[11], (1, NUM_CLASSES), jnp.float32),
    }


def reference_forward(x_nchw, params):
    """Pure-JAX reference (unfused, mirrors the PyTorch module in eval mode)."""
    b, c, hh, ww = x_nchw.shape
    x = jnp.transpose(x_nchw, (0, 2, 3, 1)).reshape(b, hh * ww, c)
    hdd = jnp.maximum(jnp.einsum("bpc,cd->bpd", x, params["conv_w"]) + params["conv_b"], 0.0)
    feat = jnp.mean(hdd, axis=1)
    e = feat @ params["emb_w"] + params["emb_b"]
    h1 = jnp.maximum(e @ params["fc1_w"] + params["fc1_b"], 0.0)
    h1 = (h1 - params["bn1_m"]) / jnp.sqrt(params["bn1_v"] + BN_EPS) * params["bn1_g"] + params["bn1_b"]
    h2 = jnp.tanh(h1 @ params["fc2_w"] + params["fc2_b"])
    return h2 @ params["cls_w"] + params["cls_b"]


if __name__ == "__main__":
    key = jax.random.PRNGKey(0)
    kx, kp = jax.random.split(key)
    x = jax.random.normal(kx, (B, CIN, H, W), jnp.float32)   # NCHW like PyTorch
    params = init_params(kp)

    # Fold/pack once (hoisted out of the per-call path).
    w_slab = jax.block_until_ready(fold_and_pack_params(params))

    out = custom_model_forward(x, w_slab)
    out = jax.block_until_ready(out)

    ref = reference_forward(x, params)
    assert out.shape == (B, NUM_CLASSES)
    assert jnp.allclose(out, ref, atol=1e-4, rtol=1e-4), (out, ref)
    print("KERNEL_OK")
</pallas_src>

<mosaic_0001>
module attributes {stable_mosaic.version = 11 : i64} {
  func.func @custom_model_kernel(%arg0: memref<4x512xf32, #tpu.memory_space<vmem>>, %arg1: memref<88x128xf32, #tpu.memory_space<vmem>>, %arg2: memref<8x128xf32, #tpu.memory_space<vmem>>) attributes {dimension_semantics = [], scalar_prefetch = 0 : i64, scratch_operands = 0 : i64, tpu.core_type = #tpu.core_type<tc>} {
    %c0 = arith.constant 0 : index
    %c0_0 = arith.constant 0 : index
    %0 = vector.load %arg0[%c0, %c0_0] : memref<4x512xf32, #tpu.memory_space<vmem>>, vector<4x512xf32>
    %c0_1 = arith.constant 0 : index
    %c0_2 = arith.constant 0 : index
    %1 = vector.load %arg1[%c0_1, %c0_2] : memref<88x128xf32, #tpu.memory_space<vmem>>, vector<88x128xf32>
    %2 = vector.extract_strided_slice %1 {offsets = [0, 0], sizes = [32, 128], strides = [1, 1]} : vector<88x128xf32> to vector<32x128xf32>
    %3 = vector.extract_strided_slice %2 {offsets = [0, 0], sizes = [32, 1], strides = [1, 1]} : vector<32x128xf32> to vector<32x1xf32>
    %4 = vector.extract_strided_slice %0 {offsets = [0, 0], sizes = [1, 512], strides = [1, 1]} : vector<4x512xf32> to vector<1x512xf32>
    %5 = vector.broadcast %3 : vector<32x1xf32> to vector<32x512xf32>
    %6 = vector.broadcast %4 : vector<1x512xf32> to vector<32x512xf32>
    %7 = arith.mulf %5, %6 : vector<32x512xf32>
    %8 = vector.extract_strided_slice %2 {offsets = [0, 1], sizes = [32, 1], strides = [1, 1]} : vector<32x128xf32> to vector<32x1xf32>
    %9 = vector.extract_strided_slice %0 {offsets = [1, 0], sizes = [1, 512], strides = [1, 1]} : vector<4x512xf32> to vector<1x512xf32>
    %10 = vector.broadcast %8 : vector<32x1xf32> to vector<32x512xf32>
    %11 = vector.broadcast %9 : vector<1x512xf32> to vector<32x512xf32>
    %12 = arith.mulf %10, %11 : vector<32x512xf32>
    %13 = arith.addf %7, %12 : vector<32x512xf32>
    %14 = vector.extract_strided_slice %2 {offsets = [0, 2], sizes = [32, 1], strides = [1, 1]} : vector<32x128xf32> to vector<32x1xf32>
    %15 = vector.extract_strided_slice %0 {offsets = [2, 0], sizes = [1, 512], strides = [1, 1]} : vector<4x512xf32> to vector<1x512xf32>
    %16 = vector.broadcast %14 : vector<32x1xf32> to vector<32x512xf32>
    %17 = vector.broadcast %15 : vector<1x512xf32> to vector<32x512xf32>
    %18 = arith.mulf %16, %17 : vector<32x512xf32>
    %19 = arith.addf %13, %18 : vector<32x512xf32>
    %20 = vector.extract_strided_slice %2 {offsets = [0, 3], sizes = [32, 1], strides = [1, 1]} : vector<32x128xf32> to vector<32x1xf32>
    %21 = vector.extract_strided_slice %0 {offsets = [3, 0], sizes = [1, 512], strides = [1, 1]} : vector<4x512xf32> to vector<1x512xf32>
    %22 = vector.broadcast %20 : vector<32x1xf32> to vector<32x512xf32>
    %23 = vector.broadcast %21 : vector<1x512xf32> to vector<32x512xf32>
    %24 = arith.mulf %22, %23 : vector<32x512xf32>
    %25 = arith.addf %19, %24 : vector<32x512xf32>
    %26 = vector.extract_strided_slice %2 {offsets = [0, 4], sizes = [32, 1], strides = [1, 1]} : vector<32x128xf32> to vector<32x1xf32>
    %27 = vector.broadcast %26 : vector<32x1xf32> to vector<32x512xf32>
    %28 = arith.addf %25, %27 : vector<32x512xf32>
    %cst = arith.constant 0.000000e+00 : f32
    %29 = vector.broadcast %cst : f32 to vector<32x512xf32>
    %30 = arith.maximumf %28, %29 : vector<32x512xf32>
    %31 = vector.extract_strided_slice %30 {offsets = [0, 0], sizes = [32, 256], strides = [1, 1]} : vector<32x512xf32> to vector<32x256xf32>
    %cst_3 = arith.constant dense<0.000000e+00> : vector<32xf32>
    %32 = vector.multi_reduction <add>, %31, %cst_3 [1] : vector<32x256xf32> to vector<32xf32>
    %33 = vector.shape_cast %32 : vector<32xf32> to vector<32x1xf32>
    %34 = vector.extract_strided_slice %30 {offsets = [0, 256], sizes = [32, 256], strides = [1, 1]} : vector<32x512xf32> to vector<32x256xf32>
    %cst_4 = arith.constant dense<0.000000e+00> : vector<32xf32>
    %35 = vector.multi_reduction <add>, %34, %cst_4 [1] : vector<32x256xf32> to vector<32xf32>
    %36 = vector.shape_cast %35 : vector<32xf32> to vector<32x1xf32>
    %37 = tpu.concatenate %33, %36 in 1 : vector<32x1xf32>, vector<32x1xf32> -> vector<32x2xf32>
    %38 = vector.extract_strided_slice %1 {offsets = [32, 0], sizes = [32, 128], strides = [1, 1]} : vector<88x128xf32> to vector<32x128xf32>
    %39 = vector.extract_strided_slice %38 {offsets = [0, 0], sizes = [32, 32], strides = [1, 1]} : vector<32x128xf32> to vector<32x32xf32>
    %cst_5 = arith.constant dense<0.000000e+00> : vector<32x2xf32>
    %40 = tpu.matmul %39, %37, %cst_5 {dimension_numbers = #tpu.dot_dimension_numbers<[1], [0], [0], [1], [0, 0, 1, 1], [], []>} : vector<32x32xf32>, vector<32x2xf32>, vector<32x2xf32> -> vector<32x2xf32>
    %41 = vector.extract_strided_slice %38 {offsets = [0, 32], sizes = [32, 1], strides = [1, 1]} : vector<32x128xf32> to vector<32x1xf32>
    %42 = vector.broadcast %41 : vector<32x1xf32> to vector<32x2xf32>
    %43 = arith.addf %40, %42 : vector<32x2xf32>
    %cst_6 = arith.constant 0.000000e+00 : f32
    %44 = vector.broadcast %cst_6 : f32 to vector<32x2xf32>
    %45 = arith.maximumf %43, %44 : vector<32x2xf32>
    %46 = vector.extract_strided_slice %1 {offsets = [64, 0], sizes = [16, 128], strides = [1, 1]} : vector<88x128xf32> to vector<16x128xf32>
    %47 = vector.extract_strided_slice %46 {offsets = [0, 0], sizes = [16, 32], strides = [1, 1]} : vector<16x128xf32> to vector<16x32xf32>
    %cst_7 = arith.constant dense<0.000000e+00> : vector<16x2xf32>
    %48 = tpu.matmul %47, %45, %cst_7 {dimension_numbers = #tpu.dot_dimension_numbers<[1], [0], [0], [1], [0, 0, 1, 1], [], []>} : vector<16x32xf32>, vector<32x2xf32>, vector<16x2xf32> -> vector<16x2xf32>
    %49 = vector.extract_strided_slice %46 {offsets = [0, 32], sizes = [16, 1], strides = [1, 1]} : vector<16x128xf32> to vector<16x1xf32>
    %50 = vector.broadcast %49 : vector<16x1xf32> to vector<16x2xf32>
    %51 = arith.addf %48, %50 : vector<16x2xf32>
    %52 = math.tanh %51 : vector<16x2xf32>
    %53 = vector.extract_strided_slice %1 {offsets = [80, 0], sizes = [2, 128], strides = [1, 1]} : vector<88x128xf32> to vector<2x128xf32>
    %54 = vector.extract_strided_slice %53 {offsets = [0, 0], sizes = [2, 16], strides = [1, 1]} : vector<2x128xf32> to vector<2x16xf32>
    %cst_8 = arith.constant dense<0.000000e+00> : vector<2x2xf32>
    %55 = tpu.matmul %54, %52, %cst_8 {dimension_numbers = #tpu.dot_dimension_numbers<[1], [0], [0], [1], [0, 0, 1, 1], [], []>} : vector<2x16xf32>, vector<16x2xf32>, vector<2x2xf32> -> vector<2x2xf32>
    %56 = vector.extract_strided_slice %53 {offsets = [0, 16], sizes = [2, 1], strides = [1, 1]} : vector<2x128xf32> to vector<2x1xf32>
    %57 = vector.broadcast %56 : vector<2x1xf32> to vector<2x2xf32>
    %58 = arith.addf %55, %57 : vector<2x2xf32>
    %cst_9 = arith.constant 0.000000e+00 : f32
    %59 = vector.broadcast %cst_9 : f32 to vector<8x128xf32>
    %c0_10 = arith.constant 0 : index
    %c0_11 = arith.constant 0 : index
    %60 = vector.load %arg2[%c0_10, %c0_11] : memref<8x128xf32, #tpu.memory_space<vmem>>, vector<8x128xf32>
    tpu.vector_store %arg2[%c0_10, %c0_11], %59 {strides = array<i32>} : memref<8x128xf32, #tpu.memory_space<vmem>>, vector<8x128xf32>,
    %c0_12 = arith.constant 0 : index
    %c0_13 = arith.constant 0 : index
    %61 = vector.load %arg2[%c0_12, %c0_13] : memref<8x128xf32, #tpu.memory_space<vmem>>, vector<2x2xf32>
    tpu.vector_store %arg2[%c0_12, %c0_13], %58 {strides = array<i32>} : memref<8x128xf32, #tpu.memory_space<vmem>>, vector<2x2xf32>,
    return
  }
}

</mosaic_0001>

<llo_original>
// kernel: custom_model_forward.1
$region0: #{custom_model_forward.1}
  #allocation0 [shape = 'u32[]', space=smem, size = 0x4, offset = 0x4, fixed_abs, tag = 'smem constant byte address 0x4 - core index']
  #allocation1 [shape = 'u32[144,128]{1,0:T(1,128)}', space=vmem, size = 0x12000, scoped, tag = 'internal scratch']
  %s0 = inlined_call_operand.vmem [shape: f32[4,512], index: 0, kind: input, shape index: {}]
  %s1 = inlined_call_operand.vmem [shape: f32[88,128], index: 1, kind: input, shape index: {}]
  %s2 = inlined_call_operand.vmem [shape: f32[8,128], index: 2, kind: output, shape index: {}]
  %s3 = sld [smem:[#allocation0]]
  $region18: #{custom_model_forward.1} parent=0
    _
  %s5 = ssub.s32 1, %s3
  %s6 = scalar_select 0, %s5, %s3
  // Predicated region
  $region2: #{custom_model_forward.1} parent=0 // pred_check
    _
  $region3: #{custom_model_forward.1} parent=0 // pred_check_branch
    %8 = sbr.rel (0) target = $region5
  $region4: #{custom_model_forward.1} parent=0 // pred_region
    _
  $region5: #{custom_model_forward.1} parent=0 // pred_fallthru
    _
  // Predicated region
  $region6: #{custom_model_forward.1} parent=0 // pred_check
    _
  $region7: #{custom_model_forward.1} parent=0 // pred_check_branch
    %10 = sbr.rel (0) target = $region9
  $region8: #{custom_model_forward.1} parent=0 // pred_region
    _
  $region9: #{custom_model_forward.1} parent=0 // pred_fallthru
    _
  %v11 = vld [vmem:[%s0] sm:$0xff]
  %v12 = vld [vmem:[%s0 + $0x8] sm:$0xff]
  %v13 = vld [vmem:[%s1] sm:$0xff]
  %v14 = vld [vmem:[%s1 + $0x8] sm:$0xff]
  %v15 = vld [vmem:[%s1 + $0x10] sm:$0xff]
  %v16 = vld [vmem:[%s1 + $0x18] sm:$0xff]
  %v17 = vld [vmem:[%s1 + $0x20] sm:$0xff]
  %v18 = vld [vmem:[%s1 + $0x28] sm:$0xff]
  %v19 = vld [vmem:[%s1 + $0x30] sm:$0xff]
  %v20 = vld [vmem:[%s1 + $0x38] sm:$0xff]
  %v21 = vld [vmem:[%s1 + $0x40] sm:$0xff]
  %v22 = vld [vmem:[%s1 + $0x48] sm:$0xff]
  %v23 = vld [vmem:[%s1 + $0x50] sm:$0xff]
  %25 = vset.pattern.permute.xlu0 0
  %26 = vperm.xlu0 %25, %v13
  %v27 = vpop.permute.xlu0 %26
  %30 = vset.pattern.permute.xlu0 0
  %31 = vperm.xlu0 %30, %v14
  %v32 = vpop.permute.xlu0 %31
  %35 = vset.pattern.permute.xlu0 0
  %36 = vperm.xlu0 %35, %v15
  %v37 = vpop.permute.xlu0 %36
  %40 = vset.pattern.permute.xlu0 0
  %41 = vperm.xlu0 %40, %v16
  %v42 = vpop.permute.xlu0 %41
  %v46 = vlaneseq
  %v47 = vshrl.u32 %v46, 7
  %v48 = vsub.s32 0, %v47
  %v49 = vrot.slane %v11, %v48
  %v50 = vlaneseq
  %v51 = vshrl.u32 %v50, 7
  %v52 = vsub.s32 4, %v51
  %v53 = vrot.slane %v11, %v52
  %v54 = vlaneseq
  %v55 = vshrl.u32 %v54, 7
  %v56 = vsub.s32 0, %v55
  %v57 = vrot.slane %v12, %v56
  %v58 = vlaneseq
  %v59 = vshrl.u32 %v58, 7
  %v60 = vsub.s32 4, %v59
  %v61 = vrot.slane %v12, %v60
  %v66 = vlaneseq
  %v67 = vshrl.u32 %v66, 7
  %v68 = vsub.s32 0, %v67
  %v69 = vrot.slane %v49, %v68
  %v70 = vlaneseq
  %v71 = vshrl.u32 %v70, 7
  %v72 = vsub.s32 0, %v71
  %v73 = vrot.slane %v53, %v72
  %v74 = vlaneseq
  %v75 = vshrl.u32 %v74, 7
  %v76 = vsub.s32 0, %v75
  %v77 = vrot.slane %v57, %v76
  %v78 = vlaneseq
  %v79 = vshrl.u32 %v78, 7
  %v80 = vsub.s32 0, %v79
  %v81 = vrot.slane %v61, %v80
  %v82 = vmul.f32 %v27, %v69
  %v83 = vmul.f32 %v27, %v73
  %v84 = vmul.f32 %v27, %v77
  %v85 = vmul.f32 %v27, %v81
  %v86 = vmul.f32 %v32, %v69
  %v87 = vmul.f32 %v32, %v73
  %v88 = vmul.f32 %v32, %v77
  %v89 = vmul.f32 %v32, %v81
  %v90 = vmul.f32 %v37, %v69
  %v91 = vmul.f32 %v37, %v73
  %v92 = vmul.f32 %v37, %v77
  %v93 = vmul.f32 %v37, %v81
  %v94 = vmul.f32 %v42, %v69
  %v95 = vmul.f32 %v42, %v73
  %v96 = vmul.f32 %v42, %v77
  %v97 = vmul.f32 %v42, %v81
  %98 = vset.pattern.permute.xlu0 1
  %99 = vperm.xlu0 %98, %v13
  %v100 = vpop.permute.xlu0 %99
  %102 = vset.pattern.permute.xlu0 1
  %103 = vperm.xlu0 %102, %v14
  %v104 = vpop.permute.xlu0 %103
  %106 = vset.pattern.permute.xlu0 1
  %107 = vperm.xlu0 %106, %v15
  %v108 = vpop.permute.xlu0 %107
  %110 = vset.pattern.permute.xlu0 1
  %111 = vperm.xlu0 %110, %v16
  %v112 = vpop.permute.xlu0 %111
  %v114 = vlaneseq
  %v115 = vshrl.u32 %v114, 7
  %v116 = vsub.s32 1, %v115
  %v117 = vrot.slane %v11, %v116
  %v118 = vlaneseq
  %v119 = vshrl.u32 %v118, 7
  %v120 = vsub.s32 5, %v119
  %v121 = vrot.slane %v11, %v120
  %v122 = vlaneseq
  %v123 = vshrl.u32 %v122, 7
  %v124 = vsub.s32 1, %v123
  %v125 = vrot.slane %v12, %v124
  %v126 = vlaneseq
  %v127 = vshrl.u32 %v126, 7
  %v128 = vsub.s32 5, %v127
  %v129 = vrot.slane %v12, %v128
  %v134 = vlaneseq
  %v135 = vshrl.u32 %v134, 7
  %v136 = vsub.s32 1, %v135
  %v137 = vrot.slane %v117, %v136
  %v138 = vlaneseq
  %v139 = vshrl.u32 %v138, 7
  %v140 = vsub.s32 1, %v139
  %v141 = vrot.slane %v121, %v140
  %v142 = vlaneseq
  %v143 = vshrl.u32 %v142, 7
  %v144 = vsub.s32 1, %v143
  %v145 = vrot.slane %v125, %v144
  %v146 = vlaneseq
  %v147 = vshrl.u32 %v146, 7
  %v148 = vsub.s32 1, %v147
  %v149 = vrot.slane %v129, %v148
  %v150 = vmul.f32 %v100, %v137
  %v151 = vmul.f32 %v100, %v141
  %v152 = vmul.f32 %v100, %v145
  %v153 = vmul.f32 %v100, %v149
  %v154 = vmul.f32 %v104, %v137
  %v155 = vmul.f32 %v104, %v141
  %v156 = vmul.f32 %v104, %v145
  %v157 = vmul.f32 %v104, %v149
  %v158 = vmul.f32 %v108, %v137
  %v159 = vmul.f32 %v108, %v141
  %v160 = vmul.f32 %v108, %v145
  %v161 = vmul.f32 %v108, %v149
  %v162 = vmul.f32 %v112, %v137
  %v163 = vmul.f32 %v112, %v141
  %v164 = vmul.f32 %v112, %v145
  %v165 = vmul.f32 %v112, %v149
  %v166 = vadd.f32 %v82, %v150
  %v167 = vadd.f32 %v83, %v151
  %v168 = vadd.f32 %v84, %v152
  %v169 = vadd.f32 %v85, %v153
  %v170 = vadd.f32 %v86, %v154
  %v171 = vadd.f32 %v87, %v155
  %v172 = vadd.f32 %v88, %v156
  %v173 = vadd.f32 %v89, %v157
  %v174 = vadd.f32 %v90, %v158
  %v175 = vadd.f32 %v91, %v159
  %v176 = vadd.f32 %v92, %v160
  %v177 = vadd.f32 %v93, %v161
  %v178 = vadd.f32 %v94, %v162
  %v179 = vadd.f32 %v95, %v163
  %v180 = vadd.f32 %v96, %v164
  %v181 = vadd.f32 %v97, %v165
  %182 = vset.pattern.permute.xlu0 2
  %183 = vperm.xlu0 %182, %v13
  %v184 = vpop.permute.xlu0 %183
  %186 = vset.pattern.permute.xlu0 2
  %187 = vperm.xlu0 %186, %v14
  %v188 = vpop.permute.xlu0 %187
  %190 = vset.pattern.permute.xlu0 2
  %191 = vperm.xlu0 %190, %v15
  %v192 = vpop.permute.xlu0 %191
  %194 = vset.pattern.permute.xlu0 2
  %195 = vperm.xlu0 %194, %v16
  %v196 = vpop.permute.xlu0 %195
  %v198 = vlaneseq
  %v199 = vshrl.u32 %v198, 7
  %v200 = vsub.s32 2, %v199
  %v201 = vrot.slane %v11, %v200
  %v202 = vlaneseq
  %v203 = vshrl.u32 %v202, 7
  %v204 = vsub.s32 6, %v203
  %v205 = vrot.slane %v11, %v204
  %v206 = vlaneseq
  %v207 = vshrl.u32 %v206, 7
  %v208 = vsub.s32 2, %v207
  %v209 = vrot.slane %v12, %v208
  %v210 = vlaneseq
  %v211 = vshrl.u32 %v210, 7
  %v212 = vsub.s32 6, %v211
  %v213 = vrot.slane %v12, %v212
  %v218 = vlaneseq
  %v219 = vshrl.u32 %v218, 7
  %v220 = vsub.s32 2, %v219
  %v221 = vrot.slane %v201, %v220
  %v222 = vlaneseq
  %v223 = vshrl.u32 %v222, 7
  %v224 = vsub.s32 2, %v223
  %v225 = vrot.slane %v205, %v224
  %v226 = vlaneseq
  %v227 = vshrl.u32 %v226, 7
  %v228 = vsub.s32 2, %v227
  %v229 = vrot.slane %v209, %v228
  %v230 = vlaneseq
  %v231 = vshrl.u32 %v230, 7
  %v232 = vsub.s32 2, %v231
  %v233 = vrot.slane %v213, %v232
  %v234 = vmul.f32 %v184, %v221
  %v235 = vmul.f32 %v184, %v225
  %v236 = vmul.f32 %v184, %v229
  %v237 = vmul.f32 %v184, %v233
  %v238 = vmul.f32 %v188, %v221
  %v239 = vmul.f32 %v188, %v225
  %v240 = vmul.f32 %v188, %v229
  %v241 = vmul.f32 %v188, %v233
  %v242 = vmul.f32 %v192, %v221
  %v243 = vmul.f32 %v192, %v225
  %v244 = vmul.f32 %v192, %v229
  %v245 = vmul.f32 %v192, %v233
  %v246 = vmul.f32 %v196, %v221
  %v247 = vmul.f32 %v196, %v225
  %v248 = vmul.f32 %v196, %v229
  %v249 = vmul.f32 %v196, %v233
  %v250 = vadd.f32 %v166, %v234
  %v251 = vadd.f32 %v167, %v235
  %v252 = vadd.f32 %v168, %v236
  %v253 = vadd.f32 %v169, %v237
  %v254 = vadd.f32 %v170, %v238
  %v255 = vadd.f32 %v171, %v239
  %v256 = vadd.f32 %v172, %v240
  %v257 = vadd.f32 %v173, %v241
  %v258 = vadd.f32 %v174, %v242
  %v259 = vadd.f32 %v175, %v243
  %v260 = vadd.f32 %v176, %v244
  %v261 = vadd.f32 %v177, %v245
  %v262 = vadd.f32 %v178, %v246
  %v263 = vadd.f32 %v179, %v247
  %v264 = vadd.f32 %v180, %v248
  %v265 = vadd.f32 %v181, %v249
  %266 = vset.pattern.permute.xlu0 3
  %267 = vperm.xlu0 %266, %v13
  %v268 = vpop.permute.xlu0 %267
  %270 = vset.pattern.permute.xlu0 3
  %271 = vperm.xlu0 %270, %v14
  %v272 = vpop.permute.xlu0 %271
  %274 = vset.pattern.permute.xlu0 3
  %275 = vperm.xlu0 %274, %v15
  %v276 = vpop.permute.xlu0 %275
  %278 = vset.pattern.permute.xlu0 3
  %279 = vperm.xlu0 %278, %v16
  %v280 = vpop.permute.xlu0 %279
  %v282 = vlaneseq
  %v283 = vshrl.u32 %v282, 7
  %v284 = vsub.s32 3, %v283
  %v285 = vrot.slane %v11, %v284
  %v286 = vlaneseq
  %v287 = vshrl.u32 %v286, 7
  %v288 = vsub.s32 7, %v287
  %v289 = vrot.slane %v11, %v288
  %v290 = vlaneseq
  %v291 = vshrl.u32 %v290, 7
  %v292 = vsub.s32 3, %v291
  %v293 = vrot.slane %v12, %v292
  %v294 = vlaneseq
  %v295 = vshrl.u32 %v294, 7
  %v296 = vsub.s32 7, %v295
  %v297 = vrot.slane %v12, %v296
  %v302 = vlaneseq
  %v303 = vshrl.u32 %v302, 7
  %v304 = vsub.s32 3, %v303
  %v305 = vrot.slane %v285, %v304
  %v306 = vlaneseq
  %v307 = vshrl.u32 %v306, 7
  %v308 = vsub.s32 3, %v307
  %v309 = vrot.slane %v289, %v308
  %v310 = vlaneseq
  %v311 = vshrl.u32 %v310, 7
  %v312 = vsub.s32 3, %v311
  %v313 = vrot.slane %v293, %v312
  %v314 = vlaneseq
  %v315 = vshrl.u32 %v314, 7
  %v316 = vsub.s32 3, %v315
  %v317 = vrot.slane %v297, %v316
  %v318 = vmul.f32 %v268, %v305
  %v319 = vmul.f32 %v268, %v309
  %v320 = vmul.f32 %v268, %v313
  %v321 = vmul.f32 %v268, %v317
  %v322 = vmul.f32 %v272, %v305
  %v323 = vmul.f32 %v272, %v309
  %v324 = vmul.f32 %v272, %v313
  %v325 = vmul.f32 %v272, %v317
  %v326 = vmul.f32 %v276, %v305
  %v327 = vmul.f32 %v276, %v309
  %v328 = vmul.f32 %v276, %v313
  %v329 = vmul.f32 %v276, %v317
  %v330 = vmul.f32 %v280, %v305
  %v331 = vmul.f32 %v280, %v309
  %v332 = vmul.f32 %v280, %v313
  %v333 = vmul.f32 %v280, %v317
  %v334 = vadd.f32 %v250, %v318
  %v335 = vadd.f32 %v251, %v319
  %v336 = vadd.f32 %v252, %v320
  %v337 = vadd.f32 %v253, %v321
  %v338 = vadd.f32 %v254, %v322
  %v339 = vadd.f32 %v255, %v323
  %v340 = vadd.f32 %v256, %v324
  %v341 = vadd.f32 %v257, %v325
  %v342 = vadd.f32 %v258, %v326
  %v343 = vadd.f32 %v259, %v327
  %v344 = vadd.f32 %v260, %v328
  %v345 = vadd.f32 %v261, %v329
  %v346 = vadd.f32 %v262, %v330
  %v347 = vadd.f32 %v263, %v331
  %v348 = vadd.f32 %v264, %v332
  %v349 = vadd.f32 %v265, %v333
  %350 = vset.pattern.permute.xlu0 4
  %351 = vperm.xlu0 %350, %v13
  %v352 = vpop.permute.xlu0 %351
  %354 = vset.pattern.permute.xlu0 4
  %355 = vperm.xlu0 %354, %v14
  %v356 = vpop.permute.xlu0 %355
  %358 = vset.pattern.permute.xlu0 4
  %359 = vperm.xlu0 %358, %v15
  %v360 = vpop.permute.xlu0 %359
  %362 = vset.pattern.permute.xlu0 4
  %363 = vperm.xlu0 %362, %v16
  %v364 = vpop.permute.xlu0 %363
  %v366 = vadd.f32 %v334, %v352
  %v367 = vadd.f32 %v335, %v352
  %v368 = vadd.f32 %v336, %v352
  %v369 = vadd.f32 %v337, %v352
  %v370 = vadd.f32 %v338, %v356
  %v371 = vadd.f32 %v339, %v356
  %v372 = vadd.f32 %v340, %v356
  %v373 = vadd.f32 %v341, %v356
  %v374 = vadd.f32 %v342, %v360
  %v375 = vadd.f32 %v343, %v360
  %v376 = vadd.f32 %v344, %v360
  %v377 = vadd.f32 %v345, %v360
  %v378 = vadd.f32 %v346, %v364
  %v379 = vadd.f32 %v347, %v364
  %v380 = vadd.f32 %v348, %v364
  %v381 = vadd.f32 %v349, %v364
  %v382 = vmax.f32 %v366, 0.0
  %v383 = vmax.f32 %v367, 0.0
  %v384 = vmax.f32 %v368, 0.0
  %v385 = vmax.f32 %v369, 0.0
  %v386 = vmax.f32 %v370, 0.0
  %v387 = vmax.f32 %v371, 0.0
  %v388 = vmax.f32 %v372, 0.0
  %v389 = vmax.f32 %v373, 0.0
  %v390 = vmax.f32 %v374, 0.0
  %v391 = vmax.f32 %v375, 0.0
  %v392 = vmax.f32 %v376, 0.0
  %v393 = vmax.f32 %v377, 0.0
  %v394 = vmax.f32 %v378, 0.0
  %v395 = vmax.f32 %v379, 0.0
  %v396 = vmax.f32 %v380, 0.0
  %v397 = vmax.f32 %v381, 0.0
  %v398 = vadd.f32 %v382, %v383
  %399 = vadd.xlane.f32.xlu0 %v398
  %v400 = vpop.xlane.xlu0 %399
  %v401 = vadd.f32 %v386, %v387
  %402 = vadd.xlane.f32.xlu0 %v401
  %v403 = vpop.xlane.xlu0 %402
  %v404 = vadd.f32 %v390, %v391
  %405 = vadd.xlane.f32.xlu0 %v404
  %v406 = vpop.xlane.xlu0 %405
  %v407 = vadd.f32 %v394, %v395
  %408 = vadd.xlane.f32.xlu0 %v407
  %v409 = vpop.xlane.xlu0 %408
  %v410 = vadd.f32 %v384, %v385
  %411 = vadd.xlane.f32.xlu0 %v410
  %v412 = vpop.xlane.xlu0 %411
  %v413 = vadd.f32 %v388, %v389
  %414 = vadd.xlane.f32.xlu0 %v413
  %v415 = vpop.xlane.xlu0 %414
  %v416 = vadd.f32 %v392, %v393
  %417 = vadd.xlane.f32.xlu0 %v416
  %v418 = vpop.xlane.xlu0 %417
  %v419 = vadd.f32 %v396, %v397
  %420 = vadd.xlane.f32.xlu0 %v419
  %v421 = vpop.xlane.xlu0 %420
  %vm422 = vcmask 7168
  %v423 = vsel %vm422, %v400, %v412
  %v424 = vsel %vm422, %v403, %v415
  %v425 = vsel %vm422, %v406, %v418
  %v426 = vsel %vm422, %v409, %v421
  %428 = vset.pattern.permute.xlu0 32
  %429 = vperm.xlu0 %428, %v17
  %v430 = vpop.permute.xlu0 %429
  %433 = vset.pattern.permute.xlu0 32
  %434 = vperm.xlu0 %433, %v18
  %v435 = vpop.permute.xlu0 %434
  %438 = vset.pattern.permute.xlu0 32
  %439 = vperm.xlu0 %438, %v19
  %v440 = vpop.permute.xlu0 %439
  %443 = vset.pattern.permute.xlu0 32
  %444 = vperm.xlu0 %443, %v20
  %v445 = vpop.permute.xlu0 %444
  %vm447 = vcmask 261120
  %v448 = vsel %vm447, %v17, 0
  %v450 = vsel %vm447, %v18, 0
  %v452 = vsel %vm447, %v19, 0
  %v454 = vsel %vm447, %v20, 0
  %456 = vmatprep.subr.mxu0 0.0
  %457 = vmatpush1.msra.mxu0 %v423
  %458 = vmatprep.subr.mxu0 0.0
  %459 = vmatpush1.msra.mxu0 %v424
  %460 = vmatprep.subr.mxu0 0.0
  %461 = vmatpush1.msra.mxu0 %v425
  %462 = vmatprep.subr.mxu0 0.0
  %463 = vmatpush1.msra.mxu0 %v426
  %464 = vmatprep.subr.mxu0 0.0
  %465 = vmatpush1.msra.mxu0 0.0
  %466 = vmatprep.subr.mxu0 0.0
  %467 = vmatpush1.msra.mxu0 0.0
  %468 = vmatprep.subr.mxu0 0.0
  %469 = vmatpush1.msra.mxu0 0.0
  %470 = vmatprep.subr.mxu0 0.0
  %471 = vmatpush1.msra.mxu0 0.0
  %472 = vmatprep.subr.mxu0 0.0
  %473 = vmatpush1.msra.mxu0 0.0
  %474 = vmatprep.subr.mxu0 0.0
  %475 = vmatpush1.msra.mxu0 0.0
  %476 = vmatprep.subr.mxu0 0.0
  %477 = vmatpush1.msra.mxu0 0.0
  %478 = vmatprep.subr.mxu0 0.0
  %479 = vmatpush1.msra.mxu0 0.0
  %480 = vmatprep.subr.mxu0 0.0
  %481 = vmatpush1.msra.mxu0 0.0
  %482 = vmatprep.subr.mxu0 0.0
  %483 = vmatpush1.msra.mxu0 0.0
  %484 = vmatprep.subr.mxu0 0.0
  %485 = vmatpush1.msra.mxu0 0.0
  %486 = vmatprep.subr.mxu0 0.0
  %487 = vmatpush1.msra.mxu0 0.0
  %488 = vmatprep.subr.mxu0 0.0
  %489 = vmatpush1.msra.mxu0 0.0
  %490 = vmatprep.subr.mxu0 0.0
  %491 = vmatpush1.msra.mxu0 0.0
  %492 = vmatprep.subr.mxu0 0.0
  %493 = vmatpush1.msra.mxu0 0.0
  %494 = vmatprep.subr.mxu0 0.0
  %495 = vmatpush1.msra.mxu0 0.0
  %496 = vmatprep.subr.mxu0 0.0
  %497 = vmatpush1.msra.mxu0 0.0
  %498 = vmatprep.subr.mxu0 0.0
  %499 = vmatpush1.msra.mxu0 0.0
  %500 = vmatprep.subr.mxu0 0.0
  %501 = vmatpush1.msra.mxu0 0.0
  %502 = vmatprep.subr.mxu0 0.0
  %503 = vmatpush1.msra.mxu0 0.0
  %504 = vmatprep.subr.mxu0 0.0
  %505 = vmatpush1.msra.mxu0 0.0
  %506 = vmatprep.subr.mxu0 0.0
  %507 = vmatpush1.msra.mxu0 0.0
  %508 = vmatprep.subr.mxu0 0.0
  %509 = vmatpush1.msra.mxu0 0.0
  %510 = vmatprep.subr.mxu0 0.0
  %511 = vmatpush1.msra.mxu0 0.0
  %512 = vmatprep.subr.mxu0 0.0
  %513 = vmatpush1.msra.mxu0 0.0
  %514 = vmatprep.subr.mxu0 0.0
  %515 = vmatpush1.msra.mxu0 0.0
  %516 = vmatprep.subr.mxu0 0.0
  %517 = vmatpush1.msra.mxu0 0.0
  %518 = vmatprep.subr.mxu0 0.0
  %519 = vmatpush1.msra.mxu0 0.0
  %520 = vmatprep.mubr.f32.mxu0 0.0
  %521 = vmatmul.mubr.f32.gmra.mrb[0].mxu0 %v448
  %v522 = vpop.f32.mrb[0].mxu0
  %v523 = vadd.f32 %v430, %v522
  %v524 = vpop.f32.mrb[0].mxu0
  %525 = vmatprep.mubr.f32.mxu0 0.0
  %526 = vmatmul.mubr.f32.gmra.mrb[0].mxu0 %v450
  %v527 = vpop.f32.mrb[0].mxu0
  %v528 = vadd.f32 %v435, %v527
  %v529 = vpop.f32.mrb[0].mxu0
  %530 = vmatprep.mubr.f32.mxu0 0.0
  %531 = vmatmul.mubr.f32.gmra.mrb[0].mxu0 %v452
  %v532 = vpop.f32.mrb[0].mxu0
  %v533 = vadd.f32 %v440, %v532
  %v534 = vpop.f32.mrb[0].mxu0
  %535 = vmatprep.mubr.f32.mxu0 0.0
  %536 = vmatmul.mubr.f32.gmra.mrb[0].mxu0 %v454
  %v537 = vpop.f32.mrb[0].mxu0
  %v538 = vadd.f32 %v445, %v537
  %v539 = vpop.f32.mrb[0].mxu0
  %540 = vdwg.mxu0
  %v541 = vmax.f32 %v523, 0.0
  %v542 = vmax.f32 %v528, 0.0
  %v543 = vmax.f32 %v533, 0.0
  %v544 = vmax.f32 %v538, 0.0
  %546 = vset.pattern.permute.xlu0 32
  %547 = vperm.xlu0 %546, %v21
  %v548 = vpop.permute.xlu0 %547
  %551 = vset.pattern.permute.xlu0 32
  %552 = vperm.xlu0 %551, %v22
  %v553 = vpop.permute.xlu0 %552
  %v555 = vsel %vm447, %v21, 0
  %v557 = vsel %vm447, %v22, 0
  %559 = vmatprep.subr.mxu0 0.0
  %560 = vmatpush1.msra.mxu0 %v541
  %561 = vmatprep.subr.mxu0 0.0
  %562 = vmatpush1.msra.mxu0 %v542
  %563 = vmatprep.subr.mxu0 0.0
  %564 = vmatpush1.msra.mxu0 %v543
  %565 = vmatprep.subr.mxu0 0.0
  %566 = vmatpush1.msra.mxu0 %v544
  %567 = vmatprep.subr.mxu0 0.0
  %568 = vmatpush1.msra.mxu0 0.0
  %569 = vmatprep.subr.mxu0 0.0
  %570 = vmatpush1.msra.mxu0 0.0
  %571 = vmatprep.subr.mxu0 0.0
  %572 = vmatpush1.msra.mxu0 0.0
  %573 = vmatprep.subr.mxu0 0.0
  %574 = vmatpush1.msra.mxu0 0.0
  %575 = vmatprep.subr.mxu0 0.0
  %576 = vmatpush1.msra.mxu0 0.0
  %577 = vmatprep.subr.mxu0 0.0
  %578 = vmatpush1.msra.mxu0 0.0
  %579 = vmatprep.subr.mxu0 0.0
  %580 = vmatpush1.msra.mxu0 0.0
  %581 = vmatprep.subr.mxu0 0.0
  %582 = vmatpush1.msra.mxu0 0.0
  %583 = vmatprep.subr.mxu0 0.0
  %584 = vmatpush1.msra.mxu0 0.0
  %585 = vmatprep.subr.mxu0 0.0
  %586 = vmatpush1.msra.mxu0 0.0
  %587 = vmatprep.subr.mxu0 0.0
  %588 = vmatpush1.msra.mxu0 0.0
  %589 = vmatprep.subr.mxu0 0.0
  %590 = vmatpush1.msra.mxu0 0.0
  %591 = vmatprep.subr.mxu0 0.0
  %592 = vmatpush1.msra.mxu0 0.0
  %593 = vmatprep.subr.mxu0 0.0
  %594 = vmatpush1.msra.mxu0 0.0
  %595 = vmatprep.subr.mxu0 0.0
  %596 = vmatpush1.msra.mxu0 0.0
  %597 = vmatprep.subr.mxu0 0.0
  %598 = vmatpush1.msra.mxu0 0.0
  %599 = vmatprep.subr.mxu0 0.0
  %600 = vmatpush1.msra.mxu0 0.0
  %601 = vmatprep.subr.mxu0 0.0
  %602 = vmatpush1.msra.mxu0 0.0
  %603 = vmatprep.subr.mxu0 0.0
  %604 = vmatpush1.msra.mxu0 0.0
  %605 = vmatprep.subr.mxu0 0.0
  %606 = vmatpush1.msra.mxu0 0.0
  %607 = vmatprep.subr.mxu0 0.0
  %608 = vmatpush1.msra.mxu0 0.0
  %609 = vmatprep.subr.mxu0 0.0
  %610 = vmatpush1.msra.mxu0 0.0
  %611 = vmatprep.subr.mxu0 0.0
  %612 = vmatpush1.msra.mxu0 0.0
  %613 = vmatprep.subr.mxu0 0.0
  %614 = vmatpush1.msra.mxu0 0.0
  %615 = vmatprep.subr.mxu0 0.0
  %616 = vmatpush1.msra.mxu0 0.0
  %617 = vmatprep.subr.mxu0 0.0
  %618 = vmatpush1.msra.mxu0 0.0
  %619 = vmatprep.subr.mxu0 0.0
  %620 = vmatpush1.msra.mxu0 0.0
  %621 = vmatprep.subr.mxu0 0.0
  %622 = vmatpush1.msra.mxu0 0.0
  %623 = vmatprep.mubr.f32.mxu0 0.0
  %624 = vmatmul.mubr.f32.gmra.mrb[0].mxu0 %v555
  %v625 = vpop.f32.mrb[0].mxu0
  %v626 = vadd.f32 %v548, %v625
  %v627 = vpop.f32.mrb[0].mxu0
  %628 = vmatprep.mubr.f32.mxu0 0.0
  %629 = vmatmul.mubr.f32.gmra.mrb[0].mxu0 %v557
  %v630 = vpop.f32.mrb[0].mxu0
  %v631 = vadd.f32 %v553, %v630
  %v632 = vpop.f32.mrb[0].mxu0
  %633 = vdwg.mxu0
  %v634 = vtanh.pop %v626
  %v635 = vtanh.pop %v631
  %637 = vset.pattern.permute.xlu0 16
  %638 = vperm.xlu0 %637, %v23
  %v639 = vpop.permute.xlu0 %638
  %vm641 = vcmask 130048
  %v642 = vsel %vm641, %v23, 0
  %644 = vmatprep.subr.mxu0 0.0
  %645 = vmatpush1.msra.mxu0 %v634
  %646 = vmatprep.subr.mxu0 0.0
  %647 = vmatpush1.msra.mxu0 %v635
  %648 = vmatprep.subr.mxu0 0.0
  %649 = vmatpush1.msra.mxu0 0.0
  %650 = vmatprep.subr.mxu0 0.0
  %651 = vmatpush1.msra.mxu0 0.0
  %652 = vmatprep.subr.mxu0 0.0
  %653 = vmatpush1.msra.mxu0 0.0
  %654 = vmatprep.subr.mxu0 0.0
  %655 = vmatpush1.msra.mxu0 0.0
  %656 = vmatprep.subr.mxu0 0.0
  %657 = vmatpush1.msra.mxu0 0.0
  %658 = vmatprep.subr.mxu0 0.0
  %659 = vmatpush1.msra.mxu0 0.0
  %660 = vmatprep.subr.mxu0 0.0
  %661 = vmatpush1.msra.mxu0 0.0
  %662 = vmatprep.subr.mxu0 0.0
  %663 = vmatpush1.msra.mxu0 0.0
  %664 = vmatprep.subr.mxu0 0.0
  %665 = vmatpush1.msra.mxu0 0.0
  %666 = vmatprep.subr.mxu0 0.0
  %667 = vmatpush1.msra.mxu0 0.0
  %668 = vmatprep.subr.mxu0 0.0
  %669 = vmatpush1.msra.mxu0 0.0
  %670 = vmatprep.subr.mxu0 0.0
  %671 = vmatpush1.msra.mxu0 0.0
  %672 = vmatprep.subr.mxu0 0.0
  %673 = vmatpush1.msra.mxu0 0.0
  %674 = vmatprep.subr.mxu0 0.0
  %675 = vmatpush1.msra.mxu0 0.0
  %676 = vmatprep.subr.mxu0 0.0
  %677 = vmatpush1.msra.mxu0 0.0
  %678 = vmatprep.subr.mxu0 0.0
  %679 = vmatpush1.msra.mxu0 0.0
  %680 = vmatprep.subr.mxu0 0.0
  %681 = vmatpush1.msra.mxu0 0.0
  %682 = vmatprep.subr.mxu0 0.0
  %683 = vmatpush1.msra.mxu0 0.0
  %684 = vmatprep.subr.mxu0 0.0
  %685 = vmatpush1.msra.mxu0 0.0
  %686 = vmatprep.subr.mxu0 0.0
  %687 = vmatpush1.msra.mxu0 0.0
  %688 = vmatprep.subr.mxu0 0.0
  %689 = vmatpush1.msra.mxu0 0.0
  %690 = vmatprep.subr.mxu0 0.0
  %691 = vmatpush1.msra.mxu0 0.0
  %692 = vmatprep.subr.mxu0 0.0
  %693 = vmatpush1.msra.mxu0 0.0
  %694 = vmatprep.subr.mxu0 0.0
  %695 = vmatpush1.msra.mxu0 0.0
  %696 = vmatprep.subr.mxu0 0.0
  %697 = vmatpush1.msra.mxu0 0.0
  %698 = vmatprep.subr.mxu0 0.0
  %699 = vmatpush1.msra.mxu0 0.0
  %700 = vmatprep.subr.mxu0 0.0
  %701 = vmatpush1.msra.mxu0 0.0
  %702 = vmatprep.subr.mxu0 0.0
  %703 = vmatpush1.msra.mxu0 0.0
  %704 = vmatprep.subr.mxu0 0.0
  %705 = vmatpush1.msra.mxu0 0.0
  %706 = vmatprep.subr.mxu0 0.0
  %707 = vmatpush1.msra.mxu0 0.0
  %708 = vmatprep.mubr.f32.mxu0 0.0
  %709 = vmatmul.mubr.f32.gmra.mrb[0].mxu0 %v642
  %v710 = vpop.f32.mrb[0].mxu0
  %v711 = vadd.f32 %v639, %v710
  %v712 = vpop.f32.mrb[0].mxu0
  %713 = vdwg.mxu0
  %714 = vst [vmem:[%s2] sm:$0xff] 0.0
  %vm715 = vcmask 9216
  %716 = vst.msk [vmem:[%s2] sm:$0x3] %vm715, %v711
  // Predicated region
  $region10: #{custom_model_forward.1} parent=0 // pred_check
    _
  $region11: #{custom_model_forward.1} parent=0 // pred_check_branch
    %718 = sbr.rel (0) target = $region13
  $region12: #{custom_model_forward.1} parent=0 // pred_region
    _
  $region13: #{custom_model_forward.1} parent=0 // pred_fallthru
    _
  // Predicated region
  $region14: #{custom_model_forward.1} parent=0 // pred_check
    _
  $region15: #{custom_model_forward.1} parent=0 // pred_check_branch
    %720 = sbr.rel (0) target = $region17
  $region16: #{custom_model_forward.1} parent=0 // pred_region
    _
  $region17: #{custom_model_forward.1} parent=0 // pred_fallthru
    _

</llo_original>
